<compile_context>
chip_gen: v7x
topology: tpu7x:2x2x1
jax: 0.10.0
libtpu: 0.0.40
codegen_flags: <defaults>
</compile_context>

<pallas_src>
import numpy as np
import jax
import jax.numpy as jnp
from jax.experimental import pallas as pl
from jax.experimental.pallas import tpu as pltpu


_TARGET_BLOCK_BYTES = 3 << 20    # ~3 MiB of g/x/out bytes per pipeline buffer
_VMEM_DATA_BUDGET = 20 << 20     # double buffers + in-kernel temporaries
_VMEM_LIMIT_BYTES = 32 << 20     # explicit scoped-VMEM limit (safe on v5e/v6e/v7x)


def _attention_gate_kernel(g_ref, x_ref, wg_ref, wx_ref, bgx_ref,
                           wp_ref, bp_ref, o_ref):
    # g_ref / x_ref / o_ref : (Nb, Cin, Lt)  f32
    # wg/wx : (Cout, Cin) bf16   bgx : (Cout, 1) f32  (bg + bx folded)
    # wp    : (1, Cout)  bf16    bp  : (1, 1)   f32
    wg = wg_ref[...]
    wx = wx_ref[...]
    bgx = bgx_ref[...]
    wp = wp_ref[...]
    bp = bp_ref[...]

    for b in range(g_ref.shape[0]):                  # static, small (usually 1)
        g = g_ref[b].astype(jnp.bfloat16)            # in-kernel cast (free, VPU)
        x = x_ref[b]                                 # f32: also gates the output

        # Conv1x1 + folded BN for both branches (f32 accumulation on the MXU).
        g1 = jnp.dot(wg, g, preferred_element_type=jnp.float32)
        x1 = jnp.dot(wx, x.astype(jnp.bfloat16),
                     preferred_element_type=jnp.float32)
        a = g1 + x1 + bgx
        a = jnp.maximum(a, 0.01 * a)                 # LeakyReLU (slope 0.01)

        # psi branch: Conv1x1 (Cout -> 1) + folded BN + sigmoid.
        psi = jnp.dot(wp, a.astype(jnp.bfloat16),
                      preferred_element_type=jnp.float32) + bp
        psi = pl.reciprocal(1.0 + jnp.exp(-psi), approx=True)   # sigmoid (EUP)

        o_ref[b] = (x * psi).astype(o_ref.dtype)     # gate broadcast over channels


def _fold_conv_bn(w, b, gamma, beta, mean, var, eps=1e-5):
    """Fold eval-mode BatchNorm2d into a preceding 1x1 conv. w: (Cout, Cin)."""
    s = gamma / jnp.sqrt(var + eps)
    return w * s[:, None], s * b + (beta - s * mean)


def _round_up8(c):
    return max(((c + 7) // 8) * 8, 8)


def _pick_lt(hw, max_lanes):
    """Largest multiple-of-128 divisor of hw that is <= max_lanes."""
    best_aligned = 0
    i = 1
    while i * i <= hw:
        if hw % i == 0:
            for d in (i, hw // i):
                if d % 128 == 0 and d <= max_lanes and d > best_aligned:
                    best_aligned = d
        i += 1
    if best_aligned:
        return best_aligned
    # hw has no lane-aligned divisor (hw % 128 != 0): take the full row.
    # TODO(synk): a huge non-128-aligned H*W would need boundary-masked tiling.
    return hw


def _tile_plan(n, cin, cout, hw, target_block_bytes):
    """Pick (Nb, Lt): batch images per block and lanes per block."""
    cin_p, cout_p = _round_up8(cin), _round_up8(cout)
    io_bytes_per_lane = 12 * cin_p                    # g + x + out (f32), 1 buffer
    # double-buffered blocks + bf16 casts + matmul outputs / activation temps
    tot_bytes_per_lane = 24 * cin_p + 4 * cin_p + 16 * cout_p
    max_lanes = max(128, min(target_block_bytes // io_bytes_per_lane,
                             _VMEM_DATA_BUDGET // tot_bytes_per_lane))
    lt = _pick_lt(hw, max_lanes)
    spatial_tiles = hw // lt

    # Batch blocking: amortize per-step overhead when spatial blocks are small,
    # but keep >= 2 grid steps (megacore / v7x two-TensorCore sharding).
    nb = 1
    for cand in range(n, 0, -1):
        if n % cand:
            continue
        steps = (n // cand) * spatial_tiles
        if cand * lt <= max_lanes and (steps >= 2 or n * spatial_tiles < 2):
            nb = cand
            break
    return nb, lt


def attention_gate(g, x, params, *, target_block_bytes=_TARGET_BLOCK_BYTES):
    """Pallas equivalent of AttentionGate.forward(g, x) (inference-mode BN).

    g, x: (N, Cin, H, W) float32 in NCHW (PyTorch layout). Returns same shape.
    """
    N, Cin, H, W = x.shape
    assert g.shape == x.shape
    Cout = params["wg"].shape[0]
    HW = H * W
    Nb, Lt = _tile_plan(N, Cin, Cout, HW, target_block_bytes)

    # Fold each Conv1x1 + BatchNorm into a single affine transform.
    wg, bg = _fold_conv_bn(params["wg"].reshape(Cout, Cin), params["bg"],
                           params["g_gamma"], params["g_beta"],
                           params["g_mean"], params["g_var"])
    wx, bx = _fold_conv_bn(params["wx"].reshape(Cout, Cin), params["bx"],
                           params["x_gamma"], params["x_beta"],
                           params["x_mean"], params["x_var"])
    wp, bp = _fold_conv_bn(params["wp"].reshape(1, Cout), params["bp"],
                           params["p_gamma"], params["p_beta"],
                           params["p_mean"], params["p_var"])
    bgx = (bg + bx).reshape(Cout, 1).astype(jnp.float32)   # single combined bias

    # NCHW stays put; just flatten spatial so pixels sit on the lane axis.
    # No dtype conversion pass here: g is cast to bf16 inside the kernel.
    g_flat = g.reshape(N, Cin, HW).astype(jnp.float32)
    x_flat = x.reshape(N, Cin, HW).astype(jnp.float32)

    out_flat = pl.pallas_call(
        _attention_gate_kernel,
        out_shape=jax.ShapeDtypeStruct((N, Cin, HW), jnp.float32),
        grid_spec=pltpu.PrefetchScalarGridSpec(
            num_scalar_prefetch=0,
            grid=(N // Nb, HW // Lt),
            in_specs=[
                pl.BlockSpec((Nb, Cin, Lt), lambda n, t: (n, 0, t)),   # g
                pl.BlockSpec((Nb, Cin, Lt), lambda n, t: (n, 0, t)),   # x
                pl.BlockSpec((Cout, Cin), lambda n, t: (0, 0)),        # Wg
                pl.BlockSpec((Cout, Cin), lambda n, t: (0, 0)),        # Wx
                pl.BlockSpec((Cout, 1), lambda n, t: (0, 0)),          # bg + bx
                pl.BlockSpec((1, Cout), lambda n, t: (0, 0)),          # Wpsi
                pl.BlockSpec((1, 1), lambda n, t: (0, 0)),             # bpsi
            ],
            out_specs=pl.BlockSpec((Nb, Cin, Lt), lambda n, t: (n, 0, t)),
        ),
        compiler_params=pltpu.CompilerParams(
            dimension_semantics=("parallel", "parallel"),
            vmem_limit_bytes=_VMEM_LIMIT_BYTES),
    )(
        g_flat, x_flat,
        wg.astype(jnp.bfloat16), wx.astype(jnp.bfloat16), bgx,
        wp.astype(jnp.bfloat16), bp.reshape(1, 1).astype(jnp.float32),
    )
    return out_flat.reshape(N, Cin, H, W)   # free reshape, still NCHW


# ----------------------------- NumPy reference -----------------------------
def _attention_gate_ref(g, x, p, eps=1e-5):
    def conv_bn(inp, w, b, gamma, beta, mean, var):
        co = w.shape[0]
        y = np.einsum('oi,nihw->nohw', w.reshape(co, -1), inp) \
            + b[None, :, None, None]
        s = gamma / np.sqrt(var + eps)
        return (s[None, :, None, None] * (y - mean[None, :, None, None])
                + beta[None, :, None, None])

    g1 = conv_bn(g, p["wg"], p["bg"], p["g_gamma"], p["g_beta"],
                 p["g_mean"], p["g_var"])
    x1 = conv_bn(x, p["wx"], p["bx"], p["x_gamma"], p["x_beta"],
                 p["x_mean"], p["x_var"])
    a = g1 + x1
    a = np.where(a >= 0, a, 0.01 * a)
    psi = conv_bn(a, p["wp"], p["bp"], p["p_gamma"], p["p_beta"],
                  p["p_mean"], p["p_var"])
    psi = 1.0 / (1.0 + np.exp(-psi))
    return x * psi


if __name__ == "__main__":
    key = jax.random.PRNGKey(0)
    # (N, Cin, Cout, H, W, target_block_bytes_override)
    configs = [
        (2, 4, 8, 16, 16, None),        # small canonical shapes, Nb=1
        (4, 4, 8, 16, 16, None),        # small spatial -> batch-blocked (Nb>1)
        (2, 3, 16, 32, 32, 64 * 1024),  # forced multi-spatial-tile path
    ]
    for (N, Cin, Cout, H, W, tgt) in configs:
        keys = jax.random.split(key, 24)
        key = keys[-1]
        b1 = 1.0 / np.sqrt(Cin)       # PyTorch-style Conv2d init bounds
        b2 = 1.0 / np.sqrt(Cout)
        params = {
            "wg": jax.random.uniform(keys[0], (Cout, Cin, 1, 1), jnp.float32, -b1, b1),
            "bg": jax.random.uniform(keys[1], (Cout,), jnp.float32, -b1, b1),
            "wx": jax.random.uniform(keys[2], (Cout, Cin, 1, 1), jnp.float32, -b1, b1),
            "bx": jax.random.uniform(keys[3], (Cout,), jnp.float32, -b1, b1),
            "wp": jax.random.uniform(keys[4], (1, Cout, 1, 1), jnp.float32, -b2, b2),
            "bp": jax.random.uniform(keys[5], (1,), jnp.float32, -b2, b2),
            # non-trivial (well-conditioned) BatchNorm affine + running stats
            "g_gamma": jax.random.uniform(keys[6], (Cout,), jnp.float32, 0.8, 1.2),
            "g_beta":  jax.random.uniform(keys[7], (Cout,), jnp.float32, -0.2, 0.2),
            "g_mean":  jax.random.uniform(keys[8], (Cout,), jnp.float32, -0.2, 0.2),
            "g_var":   jax.random.uniform(keys[9], (Cout,), jnp.float32, 0.8, 1.2),
            "x_gamma": jax.random.uniform(keys[10], (Cout,), jnp.float32, 0.8, 1.2),
            "x_beta":  jax.random.uniform(keys[11], (Cout,), jnp.float32, -0.2, 0.2),
            "x_mean":  jax.random.uniform(keys[12], (Cout,), jnp.float32, -0.2, 0.2),
            "x_var":   jax.random.uniform(keys[13], (Cout,), jnp.float32, 0.8, 1.2),
            "p_gamma": jax.random.uniform(keys[14], (1,), jnp.float32, 0.8, 1.2),
            "p_beta":  jax.random.uniform(keys[15], (1,), jnp.float32, -0.2, 0.2),
            "p_mean":  jax.random.uniform(keys[16], (1,), jnp.float32, -0.2, 0.2),
            "p_var":   jax.random.uniform(keys[17], (1,), jnp.float32, 0.8, 1.2),
        }
        g_in = jax.random.uniform(keys[18], (N, Cin, H, W), jnp.float32)
        x_in = jax.random.uniform(keys[19], (N, Cin, H, W), jnp.float32)

        kwargs = {} if tgt is None else {"target_block_bytes": tgt}
        y = jax.block_until_ready(attention_gate(g_in, x_in, params, **kwargs))

        ref = _attention_gate_ref(np.asarray(g_in), np.asarray(x_in),
                                  {k: np.asarray(v) for k, v in params.items()})
        assert y.shape == ref.shape, (y.shape, ref.shape)
        # bf16 MXU inputs with f32 accumulation -> ~1e-2 end-to-end tolerance.
        np.testing.assert_allclose(np.asarray(y), ref, rtol=1e-2, atol=1e-2)

    print("KERNEL_OK")
</pallas_src>

<mosaic_0001>
module attributes {stable_mosaic.version = 11 : i64} {
  func.func @_attention_gate_kernel(%arg0: i32, %arg1: i32, %arg2: memref<1x4x256xf32, #tpu.memory_space<vmem>>, %arg3: memref<1x4x256xf32, #tpu.memory_space<vmem>>, %arg4: memref<8x4xbf16, #tpu.memory_space<vmem>>, %arg5: memref<8x4xbf16, #tpu.memory_space<vmem>>, %arg6: memref<8x1xf32, #tpu.memory_space<vmem>>, %arg7: memref<1x8xbf16, #tpu.memory_space<vmem>>, %arg8: memref<1x1xf32, #tpu.memory_space<vmem>>, %arg9: memref<1x4x256xf32, #tpu.memory_space<vmem>>) attributes {dimension_semantics = [#tpu.dimension_semantics<parallel>, #tpu.dimension_semantics<parallel>], iteration_bounds = array<i64: 2, 1>, scalar_prefetch = 0 : i64, scratch_operands = 0 : i64, tpu.core_type = #tpu.core_type<tc>, window_params = [{transform_indices = @transform_0, window_bounds = array<i64: 1, 4, 256>}, {transform_indices = @transform_1, window_bounds = array<i64: 1, 4, 256>}, {pipeline_mode = #tpu.pipeline_mode<synchronous>, transform_indices = @transform_2, window_bounds = array<i64: 8, 4>}, {pipeline_mode = #tpu.pipeline_mode<synchronous>, transform_indices = @transform_3, window_bounds = array<i64: 8, 4>}, {pipeline_mode = #tpu.pipeline_mode<synchronous>, transform_indices = @transform_4, window_bounds = array<i64: 8, 1>}, {pipeline_mode = #tpu.pipeline_mode<synchronous>, transform_indices = @transform_5, window_bounds = array<i64: 1, 8>}, {pipeline_mode = #tpu.pipeline_mode<synchronous>, transform_indices = @transform_6, window_bounds = array<i64: 1, 1>}, {transform_indices = @transform_7, window_bounds = array<i64: 1, 4, 256>}]} {
    %c0 = arith.constant 0 : index
    %c0_0 = arith.constant 0 : index
    %0 = vector.load %arg4[%c0, %c0_0] : memref<8x4xbf16, #tpu.memory_space<vmem>>, vector<8x4xbf16>
    %c0_1 = arith.constant 0 : index
    %c0_2 = arith.constant 0 : index
    %1 = vector.load %arg5[%c0_1, %c0_2] : memref<8x4xbf16, #tpu.memory_space<vmem>>, vector<8x4xbf16>
    %c0_3 = arith.constant 0 : index
    %c0_4 = arith.constant 0 : index
    %2 = vector.load %arg6[%c0_3, %c0_4] : memref<8x1xf32, #tpu.memory_space<vmem>>, vector<8x1xf32>
    %c0_5 = arith.constant 0 : index
    %c0_6 = arith.constant 0 : index
    %3 = vector.load %arg7[%c0_5, %c0_6] : memref<1x8xbf16, #tpu.memory_space<vmem>>, vector<1x8xbf16>
    %c0_7 = arith.constant 0 : index
    %c0_8 = arith.constant 0 : index
    %4 = vector.load %arg8[%c0_7, %c0_8] : memref<1x1xf32, #tpu.memory_space<vmem>>, vector<1x1xf32>
    %c0_9 = arith.constant 0 : index
    %c0_10 = arith.constant 0 : index
    %c0_11 = arith.constant 0 : index
    %5 = vector.load %arg2[%c0_9, %c0_10, %c0_11] : memref<1x4x256xf32, #tpu.memory_space<vmem>>, vector<1x4x256xf32>
    %6 = vector.shape_cast %5 : vector<1x4x256xf32> to vector<4x256xf32>
    %7 = arith.truncf %6 : vector<4x256xf32> to vector<4x256xbf16>
    %c0_12 = arith.constant 0 : index
    %c0_13 = arith.constant 0 : index
    %c0_14 = arith.constant 0 : index
    %8 = vector.load %arg3[%c0_12, %c0_13, %c0_14] : memref<1x4x256xf32, #tpu.memory_space<vmem>>, vector<1x4x256xf32>
    %9 = vector.shape_cast %8 : vector<1x4x256xf32> to vector<4x256xf32>
    %cst = arith.constant dense<0.000000e+00> : vector<8x256xf32>
    %10 = tpu.matmul %0, %7, %cst {dimension_numbers = #tpu.dot_dimension_numbers<[1], [0], [0], [1], [0, 0, 1, 1], [], []>} : vector<8x4xbf16>, vector<4x256xbf16>, vector<8x256xf32> -> vector<8x256xf32>
    %11 = arith.truncf %9 : vector<4x256xf32> to vector<4x256xbf16>
    %cst_15 = arith.constant dense<0.000000e+00> : vector<8x256xf32>
    %12 = tpu.matmul %1, %11, %cst_15 {dimension_numbers = #tpu.dot_dimension_numbers<[1], [0], [0], [1], [0, 0, 1, 1], [], []>} : vector<8x4xbf16>, vector<4x256xbf16>, vector<8x256xf32> -> vector<8x256xf32>
    %13 = arith.addf %10, %12 : vector<8x256xf32>
    %14 = vector.broadcast %2 : vector<8x1xf32> to vector<8x256xf32>
    %15 = arith.addf %13, %14 : vector<8x256xf32>
    %cst_16 = arith.constant 0.00999999977 : f32
    %16 = vector.broadcast %cst_16 : f32 to vector<8x256xf32>
    %17 = arith.mulf %16, %15 : vector<8x256xf32>
    %18 = arith.maximumf %15, %17 : vector<8x256xf32>
    %19 = arith.truncf %18 : vector<8x256xf32> to vector<8x256xbf16>
    %cst_17 = arith.constant dense<0.000000e+00> : vector<1x256xf32>
    %20 = tpu.matmul %3, %19, %cst_17 {dimension_numbers = #tpu.dot_dimension_numbers<[1], [0], [0], [1], [0, 0, 1, 1], [], []>} : vector<1x8xbf16>, vector<8x256xbf16>, vector<1x256xf32> -> vector<1x256xf32>
    %21 = vector.broadcast %4 : vector<1x1xf32> to vector<1x256xf32>
    %22 = arith.addf %20, %21 : vector<1x256xf32>
    %cst_18 = arith.constant 0.000000e+00 : f32
    %23 = vector.broadcast %cst_18 : f32 to vector<1x256xf32>
    %24 = arith.subf %23, %22 : vector<1x256xf32>
    %25 = math.exp %24 : vector<1x256xf32>
    %cst_19 = arith.constant 1.000000e+00 : f32
    %26 = vector.broadcast %cst_19 : f32 to vector<1x256xf32>
    %27 = arith.addf %26, %25 : vector<1x256xf32>
    %28 = tpu.reciprocal %27 {approx = true} : vector<1x256xf32> -> vector<1x256xf32>
    %29 = vector.broadcast %28 : vector<1x256xf32> to vector<4x256xf32>
    %30 = arith.mulf %9, %29 : vector<4x256xf32>
    %c0_20 = arith.constant 0 : index
    %c0_21 = arith.constant 0 : index
    %c0_22 = arith.constant 0 : index
    %31 = vector.load %arg9[%c0_20, %c0_21, %c0_22] : memref<1x4x256xf32, #tpu.memory_space<vmem>>, vector<1x4x256xf32>
    %32 = vector.shape_cast %31 : vector<1x4x256xf32> to vector<4x256xf32>
    %33 = vector.shape_cast %30 : vector<4x256xf32> to vector<1x4x256xf32>
    tpu.vector_store %arg9[%c0_20, %c0_21, %c0_22], %33 {strides = array<i32>} : memref<1x4x256xf32, #tpu.memory_space<vmem>>, vector<1x4x256xf32>,
    return
  }
  func.func @transform_0(%arg0: i32, %arg1: i32) -> (i32, i32, i32) {
    %c0_i32 = arith.constant 0 : i32
    %c0_i32_0 = arith.constant 0 : i32
    return %arg0, %c0_i32, %arg1 : i32, i32, i32
  }
  func.func @transform_1(%arg0: i32, %arg1: i32) -> (i32, i32, i32) {
    %c0_i32 = arith.constant 0 : i32
    %c0_i32_0 = arith.constant 0 : i32
    return %arg0, %c0_i32, %arg1 : i32, i32, i32
  }
  func.func @transform_2(%arg0: i32, %arg1: i32) -> (i32, i32) {
    %c0_i32 = arith.constant 0 : i32
    %c0_i32_0 = arith.constant 0 : i32
    %c0_i32_1 = arith.constant 0 : i32
    return %c0_i32, %c0_i32_0 : i32, i32
  }
  func.func @transform_3(%arg0: i32, %arg1: i32) -> (i32, i32) {
    %c0_i32 = arith.constant 0 : i32
    %c0_i32_0 = arith.constant 0 : i32
    %c0_i32_1 = arith.constant 0 : i32
    return %c0_i32, %c0_i32_0 : i32, i32
  }
  func.func @transform_4(%arg0: i32, %arg1: i32) -> (i32, i32) {
    %c0_i32 = arith.constant 0 : i32
    %c0_i32_0 = arith.constant 0 : i32
    %c0_i32_1 = arith.constant 0 : i32
    return %c0_i32, %c0_i32_0 : i32, i32
  }
  func.func @transform_5(%arg0: i32, %arg1: i32) -> (i32, i32) {
    %c0_i32 = arith.constant 0 : i32
    %c0_i32_0 = arith.constant 0 : i32
    %c0_i32_1 = arith.constant 0 : i32
    return %c0_i32, %c0_i32_0 : i32, i32
  }
  func.func @transform_6(%arg0: i32, %arg1: i32) -> (i32, i32) {
    %c0_i32 = arith.constant 0 : i32
    %c0_i32_0 = arith.constant 0 : i32
    %c0_i32_1 = arith.constant 0 : i32
    return %c0_i32, %c0_i32_0 : i32, i32
  }
  func.func @transform_7(%arg0: i32, %arg1: i32) -> (i32, i32, i32) {
    %c0_i32 = arith.constant 0 : i32
    %c0_i32_0 = arith.constant 0 : i32
    return %arg0, %c0_i32, %arg1 : i32, i32, i32
  }
}

</mosaic_0001>

<llo_original>
// kernel: tpu_custom_call.1
$region0: #{tpu_custom_call.1}
  #allocation0 [shape = 'u32[]', space=smem, size = 0x4, offset = 0x4, fixed_abs, tag = 'smem constant byte address 0x4 - core index']
  #allocation1 [shape = 'u32[144,128]{1,0:T(1,128)}', space=vmem, size = 0x12000, scoped, tag = 'internal scratch']
  #allocation2 [shape = 'f32[1,1]{1,0:T(1,128)S(1)}', space=vmem, size = 0x200, scoped, tag = 'scoped memory for tpu_custom_call.1']
  %s0 = inlined_call_operand.vmem [shape: f32[2,4,256], index: 0, kind: input, shape index: {}]
  %s1 = inlined_call_operand.hbm [shape: f32[2,4,256], index: 1, kind: input, shape index: {}]
  %s2 = inlined_call_operand.vmem [shape: bf16[8,4], index: 2, kind: input, shape index: {}]
  %s3 = inlined_call_operand.vmem [shape: bf16[8,4], index: 3, kind: input, shape index: {}]
  %s4 = inlined_call_operand.vmem [shape: f32[8,1], index: 4, kind: input, shape index: {}]
  %s5 = inlined_call_operand.vmem [shape: bf16[1,8], index: 5, kind: input, shape index: {}]
  %s6 = inlined_call_operand.<no memory space> [shape: f32[1,1], index: 6, kind: input, shape index: {}]
  %s7 = inlined_call_operand.hbm [shape: f32[2,4,256], index: 7, kind: output, shape index: {}]
  %s8 = sld [smem:[#allocation0]]
  $region65: #{tpu_custom_call.1} parent=0
    _
  %s10 = ssub.s32 1, %s8
  %s11 = scalar_select 0, %s10, %s8
  %v12 = vstv %s6
  %13 = vst [vmem:[#allocation2] sm:$0x1] %v12
  $region1: #{tpu_custom_call.1} parent=0
    #allocation3 [shape = 'u8[8192]{0}', space=vmem, size = 0x2000, scoped, tag = 'input window, operand 1']
    #allocation4 [shape = 's32[2]{0}', space=sflag, size = 0x8, scoped, tag = 'scoped memory for tpu_custom_call.1']
    #allocation5 [shape = 's32[2]{0}', space=sflag, size = 0x8, scoped, tag = 'scoped memory for tpu_custom_call.1']
    #allocation6 [shape = 'u8[8192]{0}', space=vmem, size = 0x2000, scoped, tag = 'output window, operand 0']
    %14 = vsyncpa [#allocation4], 0
    %s15 = scalar_lea.sflag [#allocation4], 1
    %16 = vsyncpa %s15, 0
    %17 = vsyncpa [#allocation5], 0
    %s18 = scalar_lea.sflag [#allocation5], 1
    %19 = vsyncpa %s18, 0
    loop: start=0, step=1, limit=4
    $region2: #{tpu_custom_call.1} parent=1 // loop_pre_header
      _
    $region3: #{tpu_custom_call.1} parent=1 // loop_header
      %s21 = sphi 0, %s25
      %p22 = scmp.ge.s32.totalorder %s21, 4
      %s28 = sphi 0, %s40
      %s29 = sphi 0, %s36
      %s30 = sphi 0, %s28
      %s31 = sphi 0, %s29
      %s32 = sphi 0, %s30
      %s33 = sphi 0, %s31
      %s45 = sphi 0, %s47
      %s48 = sphi 0, %s45
      %s49 = sphi 0, %s48
      %s65 = sphi 0, %s49
      %s73 = sphi 0, %s75
      %s76 = sphi 0, %s73
      %s77 = sphi 0, %s76
      %s93 = sphi 0, %s77
      %s97 = sphi 0, %s97
      %s99 = sphi 0, %s97
      %s100 = sphi 0, %s99
      %s114 = sphi 0, %s100
      %s118 = sphi 0, %s118
      %s120 = sphi 0, %s118
      %s121 = sphi 0, %s120
      %s135 = sphi 0, %s121
      %s139 = sphi 0, %s139
      %s141 = sphi 0, %s139
      %s142 = sphi 0, %s141
      %s156 = sphi 0, %s142
      %s160 = sphi 0, %s160
      %s162 = sphi 0, %s160
      %s163 = sphi 0, %s162
      %s177 = sphi 0, %s163
      %s181 = sphi 0, %s181
      %s183 = sphi 0, %s181
      %s184 = sphi 0, %s183
      %s198 = sphi 0, %s184
      %s206 = sphi 0, %s208
      %s209 = sphi 0, %s206
      %s210 = sphi 0, %s209
      %s226 = sphi 0, %s210
    $region4: #{tpu_custom_call.1} parent=1 // loop_header_branch
      %24 = sbr.rel (%p22) target = $region8
    $region5: #{tpu_custom_call.1} parent=1 // loop_body
      %s26 = ssub.s32 %s21, 1
      %s27 = ssub.s32 %s21, 2
      %s34 = sadd.s32 1, %s29
      %p35 = scmp.ge.s32.totalorder %s34, 1
      %s36 = scalar_select %p35, 0, %s34
      %s37 = sadd.s32 1, %s28
      %s38 = scalar_select %p35, %s37, %s28
      %p39 = scmp.ge.s32.totalorder %s38, 2
      %s40 = scalar_select %p39, 0, %s38
      %s41 = ssub.s32 %s28, %s40
      %s42 = ssub.s32 %s29, %s36
      %s43 = sor.u32 %s41, %s42
      %p44 = scmp.eq.s32.totalorder %s43, 0
      %s46 = sadd.s32 %s45, 1
      %s47 = scalar_select %p44, %s45, %s46
      %p50 = pneg %p44
      %p51 = scmp.eq.s32.totalorder %s21, 1
      %p52 = por %p50, %p51
      %p53 = scmp.ne.s32.totalorder %s45, %s48
      %p54 = scmp.eq.s32.totalorder %s21, 0
      %p55 = por %p53, %p54
      %p56 = scmp.ne.s32.totalorder %s45, %s48
      %p57 = scmp.eq.s32.totalorder %s26, 1
      %p58 = por %p56, %p57
      %p59 = scmp.ne.s32.totalorder %s48, %s49
      %p60 = scmp.eq.s32.totalorder %s26, 0
      %p61 = por %p59, %p60
      %p62 = scmp.ne.s32.totalorder %s48, %s49
      %p63 = scmp.eq.s32.totalorder %s27, 1
      %p64 = por %p62, %p63
      %p66 = scmp.ne.s32.totalorder %s49, %s65
      %p67 = scmp.eq.s32.totalorder %s27, 0
      %p68 = por %p66, %p67
      %s69 = ssub.s32 %s28, %s40
      %s70 = ssub.s32 %s29, %s36
      %s71 = sor.u32 %s69, %s70
      %p72 = scmp.eq.s32.totalorder %s71, 0
      %s74 = sadd.s32 %s73, 1
      %s75 = scalar_select %p72, %s73, %s74
      %p78 = pneg %p72
      %p79 = scmp.eq.s32.totalorder %s21, 1
      %p80 = por %p78, %p79
      %p81 = scmp.ne.s32.totalorder %s73, %s76
      %p82 = scmp.eq.s32.totalorder %s21, 0
      %p83 = por %p81, %p82
      %p84 = scmp.ne.s32.totalorder %s73, %s76
      %p85 = scmp.eq.s32.totalorder %s26, 1
      %p86 = por %p84, %p85
      %p87 = scmp.ne.s32.totalorder %s76, %s77
      %p88 = scmp.eq.s32.totalorder %s26, 0
      %p89 = por %p87, %p88
      %p90 = scmp.ne.s32.totalorder %s76, %s77
      %p91 = scmp.eq.s32.totalorder %s27, 1
      %p92 = por %p90, %p91
      %p94 = scmp.ne.s32.totalorder %s77, %s93
      %p95 = scmp.eq.s32.totalorder %s27, 0
      %p96 = por %p94, %p95
      %s98 = sadd.s32 %s97, 1
      %p101 = scmp.eq.s32.totalorder %s21, 1
      %p102 = scmp.ne.s32.totalorder %s97, %s99
      %p103 = scmp.eq.s32.totalorder %s21, 0
      %p104 = por %p102, %p103
      %p105 = scmp.ne.s32.totalorder %s97, %s99
      %p106 = scmp.eq.s32.totalorder %s26, 1
      %p107 = por %p105, %p106
      %p108 = scmp.ne.s32.totalorder %s99, %s100
      %p109 = scmp.eq.s32.totalorder %s26, 0
      %p110 = por %p108, %p109
      %p111 = scmp.ne.s32.totalorder %s99, %s100
      %p112 = scmp.eq.s32.totalorder %s27, 1
      %p113 = por %p111, %p112
      %p115 = scmp.ne.s32.totalorder %s100, %s114
      %p116 = scmp.eq.s32.totalorder %s27, 0
      %p117 = por %p115, %p116
      %s119 = sadd.s32 %s118, 1
      %p122 = scmp.eq.s32.totalorder %s21, 1
      %p123 = scmp.ne.s32.totalorder %s118, %s120
      %p124 = scmp.eq.s32.totalorder %s21, 0
      %p125 = por %p123, %p124
      %p126 = scmp.ne.s32.totalorder %s118, %s120
      %p127 = scmp.eq.s32.totalorder %s26, 1
      %p128 = por %p126, %p127
      %p129 = scmp.ne.s32.totalorder %s120, %s121
      %p130 = scmp.eq.s32.totalorder %s26, 0
      %p131 = por %p129, %p130
      %p132 = scmp.ne.s32.totalorder %s120, %s121
      %p133 = scmp.eq.s32.totalorder %s27, 1
      %p134 = por %p132, %p133
      %p136 = scmp.ne.s32.totalorder %s121, %s135
      %p137 = scmp.eq.s32.totalorder %s27, 0
      %p138 = por %p136, %p137
      %s140 = sadd.s32 %s139, 1
      %p143 = scmp.eq.s32.totalorder %s21, 1
      %p144 = scmp.ne.s32.totalorder %s139, %s141
      %p145 = scmp.eq.s32.totalorder %s21, 0
      %p146 = por %p144, %p145
      %p147 = scmp.ne.s32.totalorder %s139, %s141
      %p148 = scmp.eq.s32.totalorder %s26, 1
      %p149 = por %p147, %p148
      %p150 = scmp.ne.s32.totalorder %s141, %s142
      %p151 = scmp.eq.s32.totalorder %s26, 0
      %p152 = por %p150, %p151
      %p153 = scmp.ne.s32.totalorder %s141, %s142
      %p154 = scmp.eq.s32.totalorder %s27, 1
      %p155 = por %p153, %p154
      %p157 = scmp.ne.s32.totalorder %s142, %s156
      %p158 = scmp.eq.s32.totalorder %s27, 0
      %p159 = por %p157, %p158
      %s161 = sadd.s32 %s160, 1
      %p164 = scmp.eq.s32.totalorder %s21, 1
      %p165 = scmp.ne.s32.totalorder %s160, %s162
      %p166 = scmp.eq.s32.totalorder %s21, 0
      %p167 = por %p165, %p166
      %p168 = scmp.ne.s32.totalorder %s160, %s162
      %p169 = scmp.eq.s32.totalorder %s26, 1
      %p170 = por %p168, %p169
      %p171 = scmp.ne.s32.totalorder %s162, %s163
      %p172 = scmp.eq.s32.totalorder %s26, 0
      %p173 = por %p171, %p172
      %p174 = scmp.ne.s32.totalorder %s162, %s163
      %p175 = scmp.eq.s32.totalorder %s27, 1
      %p176 = por %p174, %p175
      %p178 = scmp.ne.s32.totalorder %s163, %s177
      %p179 = scmp.eq.s32.totalorder %s27, 0
      %p180 = por %p178, %p179
      %s182 = sadd.s32 %s181, 1
      %p185 = scmp.eq.s32.totalorder %s21, 1
      %p186 = scmp.ne.s32.totalorder %s181, %s183
      %p187 = scmp.eq.s32.totalorder %s21, 0
      %p188 = por %p186, %p187
      %p189 = scmp.ne.s32.totalorder %s181, %s183
      %p190 = scmp.eq.s32.totalorder %s26, 1
      %p191 = por %p189, %p190
      %p192 = scmp.ne.s32.totalorder %s183, %s184
      %p193 = scmp.eq.s32.totalorder %s26, 0
      %p194 = por %p192, %p193
      %p195 = scmp.ne.s32.totalorder %s183, %s184
      %p196 = scmp.eq.s32.totalorder %s27, 1
      %p197 = por %p195, %p196
      %p199 = scmp.ne.s32.totalorder %s184, %s198
      %p200 = scmp.eq.s32.totalorder %s27, 0
      %p201 = por %p199, %p200
      %s202 = ssub.s32 %s28, %s40
      %s203 = ssub.s32 %s29, %s36
      %s204 = sor.u32 %s202, %s203
      %p205 = scmp.eq.s32.totalorder %s204, 0
      %s207 = sadd.s32 %s206, 1
      %s208 = scalar_select %p205, %s206, %s207
      %p211 = pneg %p205
      %p212 = scmp.eq.s32.totalorder %s21, 1
      %p213 = por %p211, %p212
      %p214 = scmp.ne.s32.totalorder %s206, %s209
      %p215 = scmp.eq.s32.totalorder %s21, 0
      %p216 = por %p214, %p215
      %p217 = scmp.ne.s32.totalorder %s206, %s209
      %p218 = scmp.eq.s32.totalorder %s26, 1
      %p219 = por %p217, %p218
      %p220 = scmp.ne.s32.totalorder %s209, %s210
      %p221 = scmp.eq.s32.totalorder %s26, 0
      %p222 = por %p220, %p221
      %p223 = scmp.ne.s32.totalorder %s209, %s210
      %p224 = scmp.eq.s32.totalorder %s27, 1
      %p225 = por %p223, %p224
      %p227 = scmp.ne.s32.totalorder %s210, %s226
      %p228 = scmp.eq.s32.totalorder %s27, 0
      %p229 = por %p227, %p228
      %p230 = scmp.le.s32.totalorder 1, %s21
      %p231 = scmp.lt.s32.totalorder %s21, 3
      %p232 = pnand %p230, %p231
      %p233 = pneg %p232
      // Predicated region
      $region9: #{tpu_custom_call.1} parent=5 // pred_check
        _
      $region10: #{tpu_custom_call.1} parent=5 // pred_check_branch
        %235 = sbr.rel (%p232) target = $region12
      $region11: #{tpu_custom_call.1} parent=5 // pred_region
        %s236 = ssub.s32 %s21, 1
        // Predicated region
        $region13: #{tpu_custom_call.1} parent=11 // pred_check
          %p237 = pneg %p110
        $region14: #{tpu_custom_call.1} parent=11 // pred_check_branch
          %239 = sbr.rel (%p237) target = $region16
        $region15: #{tpu_custom_call.1} parent=11 // pred_region
          _
        $region16: #{tpu_custom_call.1} parent=11 // pred_fallthru
          _
        // Predicated region
        $region17: #{tpu_custom_call.1} parent=11 // pred_check
          %p240 = pneg %p131
        $region18: #{tpu_custom_call.1} parent=11 // pred_check_branch
          %242 = sbr.rel (%p240) target = $region20
        $region19: #{tpu_custom_call.1} parent=11 // pred_region
          _
        $region20: #{tpu_custom_call.1} parent=11 // pred_fallthru
          _
        // Predicated region
        $region21: #{tpu_custom_call.1} parent=11 // pred_check
          %p243 = pneg %p152
        $region22: #{tpu_custom_call.1} parent=11 // pred_check_branch
          %245 = sbr.rel (%p243) target = $region24
        $region23: #{tpu_custom_call.1} parent=11 // pred_region
          _
        $region24: #{tpu_custom_call.1} parent=11 // pred_fallthru
          _
        // Predicated region
        $region25: #{tpu_custom_call.1} parent=11 // pred_check
          %p246 = pneg %p173
        $region26: #{tpu_custom_call.1} parent=11 // pred_check_branch
          %248 = sbr.rel (%p246) target = $region28
        $region27: #{tpu_custom_call.1} parent=11 // pred_region
          _
        $region28: #{tpu_custom_call.1} parent=11 // pred_fallthru
          _
        // Predicated region
        $region29: #{tpu_custom_call.1} parent=11 // pred_check
          %p249 = pneg %p194
        $region30: #{tpu_custom_call.1} parent=11 // pred_check_branch
          %251 = sbr.rel (%p249) target = $region32
        $region31: #{tpu_custom_call.1} parent=11 // pred_region
          _
        $region32: #{tpu_custom_call.1} parent=11 // pred_fallthru
          _
      $region12: #{tpu_custom_call.1} parent=5 // pred_fallthru
        _
      %p252 = scmp.lt.s32.totalorder %s21, 2
      // Predicated region
      $region33: #{tpu_custom_call.1} parent=5 // pred_check
        %p253 = pneg %p252
      $region34: #{tpu_custom_call.1} parent=5 // pred_check_branch
        %255 = sbr.rel (%p253) target = $region36
      $region35: #{tpu_custom_call.1} parent=5 // pred_region
        // Predicated region
        $region37: #{tpu_custom_call.1} parent=35 // pred_check
          %p256 = pneg %p55
        $region38: #{tpu_custom_call.1} parent=35 // pred_check_branch
          %258 = sbr.rel (%p256) target = $region40
        $region39: #{tpu_custom_call.1} parent=35 // pred_region
          %s259 = smul.u32 2, %s29
          %p260 = scmp.lt.s32.totalorder %s28, 1
          %s261 = scalar_select %p260, %s28, 1
          %p262 = scmp.lt.s32.totalorder %s259, 1
          %s263 = scalar_select %p262, %s259, 1
          %s264 = smul.addr %s261, 2
          %s265 = sadd.s32 %s263, %s264
          %s266 = smul.addr %s265, 4
          %s267 = scalar_lea.vmem %s0, %s266
          %s268 = smul.u32 2, %s29
        $region40: #{tpu_custom_call.1} parent=35 // pred_fallthru
          _
        // Predicated region
        $region41: #{tpu_custom_call.1} parent=35 // pred_check
          %p269 = pneg %p83
        $region42: #{tpu_custom_call.1} parent=35 // pred_check_branch
          %271 = sbr.rel (%p269) target = $region44
        $region43: #{tpu_custom_call.1} parent=35 // pred_region
          %s272 = sand.u32 %s73, 1
          %s273 = scalar_lea.sflag [#allocation4], %s272
          %s274 = sand.u32 %s73, 1
          %s275 = smul.addr %s274, 8
          %s276 = scalar_lea.vmem [#allocation3], %s275
          %s277 = smul.u32 2, %s29
          %s279 = ssub.s32 128, 128
          %280 = vsyncadd %s273, %s279
          %s281 = smul.addr %s28, 2
          %s282 = sadd.s32 %s277, %s281
          %s283 = smul.addr %s282, 64
          %s284 = scalar_lea.hbm %s1, %s283
          %s286 = sshll.u32 %s276, 4
          %s287 = int_to_ptr.vmem [resolvable:$true] %s286
          %289 = dma.hbm_to_vmem [thread:$0]  %s284, 128, %s287, %s273
        $region44: #{tpu_custom_call.1} parent=35 // pred_fallthru
          _
      $region36: #{tpu_custom_call.1} parent=5 // pred_fallthru
        _
      %p290 = scmp.le.s32.totalorder 1, %s21
      %p291 = scmp.lt.s32.totalorder %s21, 3
      %p292 = pnand %p290, %p291
      %p293 = pneg %p292
      // Predicated region
      $region45: #{tpu_custom_call.1} parent=5 // pred_check
        _
      $region46: #{tpu_custom_call.1} parent=5 // pred_check_branch
        %295 = sbr.rel (%p292) target = $region48
      $region47: #{tpu_custom_call.1} parent=5 // pred_region
        %s296 = ssub.s32 %s21, 1
        %s297 = sand.u32 %s76, 1
        %s298 = scalar_lea.sflag [#allocation4], %s297
        %s299 = sand.u32 %s76, 1
        %s300 = smul.addr %s299, 8
        %s301 = scalar_lea.vmem [#allocation3], %s300
        // Predicated region
        $region49: #{tpu_custom_call.1} parent=47 // pred_check
          %p302 = pneg %p89
        $region50: #{tpu_custom_call.1} parent=47 // pred_check_branch
          %304 = sbr.rel (%p302) target = $region52
        $region51: #{tpu_custom_call.1} parent=47 // pred_region
          %305 = dma.done %s298, 128
        $region52: #{tpu_custom_call.1} parent=47 // pred_fallthru
          _
        %s306 = smul.u32 2, %s31
        %p307 = scmp.lt.s32.totalorder %s30, 1
        %s308 = scalar_select %p307, %s30, 1
        %p309 = scmp.lt.s32.totalorder %s306, 1
        %s310 = scalar_select %p309, %s306, 1
        %s311 = smul.addr %s308, 2
        %s312 = sadd.s32 %s310, %s311
        %s313 = smul.addr %s312, 4
        %s314 = scalar_lea.vmem %s0, %s313
        %p315 = pneg %p61
        %p316 = pneg %p58
        %s317 = sand.u32 %s76, 1
        %s318 = scalar_lea.sflag [#allocation4], %s317
        %s319 = sand.u32 %s76, 1
        %s320 = smul.addr %s319, 8
        %s321 = scalar_lea.vmem [#allocation3], %s320
        %p322 = pneg %p89
        %p323 = pneg %p86
        %p324 = pneg %p110
        %p325 = pneg %p107
        %p326 = pneg %p131
        %p327 = pneg %p128
        %p328 = pneg %p152
        %p329 = pneg %p149
        %p330 = pneg %p173
        %p331 = pneg %p170
        %p332 = pneg %p194
        %p333 = pneg %p191
        %p334 = pneg %p222
        %p335 = pneg %p219
        %s336 = sand.u32 %s209, 1
        %s337 = scalar_lea.sflag [#allocation5], %s336
        %s338 = sand.u32 %s209, 1
        %s339 = smul.addr %s338, 8
        %s340 = scalar_lea.vmem [#allocation6], %s339
        %s341 = smul.u32 2, %s31
        %p342 = scmp.lt.s32.totalorder %s30, 1
        %s343 = scalar_select %p342, %s30, 1
        %p344 = scmp.lt.s32.totalorder %s341, 1
        %s345 = scalar_select %p344, %s341, 1
        %s346 = smul.addr %s343, 2
        %s347 = sadd.s32 %s345, %s346
        %s348 = smul.addr %s347, 4
        %s349 = scalar_lea.vmem %s0, %s348
        %s350 = smul.u32 2, %s31
        %s351 = smul.u32 2, %s31
        %s352 = smul.u32 2, %s31
        %v354 = vld [vmem:[%s2] sm:$0xf]
        %v355 = vld [vmem:[%s3] sm:$0xf]
        %v356 = vld [vmem:[%s4] sm:$0xff]
        %v357 = vld [vmem:[%s5] sm:$0x1]
        %v358 = vld [vmem:[#allocation2] sm:$0x1]
        %v359 = vld [vmem:[%s349] sm:$0xff]
        %v361 = vcombine.high %v359, %v359
        %v363 = vpack.c.bf16 %v359, %v359
        %v364 = vpack.c.bf16 %v361, %v361
        %v365 = vld [vmem:[%s301] sm:$0xff]
        %v367 = vcombine.high %v365, %v365
        %v369 = vpack.c.bf16 %v365, %v365
        %v370 = vpack.c.bf16 %v367, %v367
        %vm371 = vcmask 31744
        %v373 = vsel %vm371, %v355, 0
        %vm375 = vcmask 1041408
        %v377 = vsel %vm375, %v369, 0
        %v380 = vsel %vm375, %v370, 0
        %382 = vmatprep.subr.bf16.mxu0 %v380
        %383 = vmatpush1.bf16.msra.mxu0 %v377
        %384 = vmatprep.subr.bf16.mxu0 0
        %385 = vmatpush1.bf16.msra.mxu0 0
        %386 = vmatprep.subr.bf16.mxu0 0
        %387 = vmatpush1.bf16.msra.mxu0 0
        %388 = vmatprep.subr.bf16.mxu0 0
        %389 = vmatpush1.bf16.msra.mxu0 0
        %390 = vmatprep.subr.bf16.mxu0 0
        %391 = vmatpush1.bf16.msra.mxu0 0
        %392 = vmatprep.subr.bf16.mxu0 0
        %393 = vmatpush1.bf16.msra.mxu0 0
        %394 = vmatprep.subr.bf16.mxu0 0
        %395 = vmatpush1.bf16.msra.mxu0 0
        %396 = vmatprep.subr.bf16.mxu0 0
        %397 = vmatpush1.bf16.msra.mxu0 0
        %398 = vmatprep.subr.bf16.mxu0 0
        %399 = vmatpush1.bf16.msra.mxu0 0
        %400 = vmatprep.subr.bf16.mxu0 0
        %401 = vmatpush1.bf16.msra.mxu0 0
        %402 = vmatprep.subr.bf16.mxu0 0
        %403 = vmatpush1.bf16.msra.mxu0 0
        %404 = vmatprep.subr.bf16.mxu0 0
        %405 = vmatpush1.bf16.msra.mxu0 0
        %406 = vmatprep.subr.bf16.mxu0 0
        %407 = vmatpush1.bf16.msra.mxu0 0
        %408 = vmatprep.subr.bf16.mxu0 0
        %409 = vmatpush1.bf16.msra.mxu0 0
        %410 = vmatprep.subr.bf16.mxu0 0
        %411 = vmatpush1.bf16.msra.mxu0 0
        %412 = vmatprep.subr.bf16.mxu0 0
        %413 = vmatpush1.bf16.msra.mxu0 0
        %414 = vmatprep.mubr.bf16.mxu0 0
        %415 = vmatmul.mubr.bf16.gmra.mrb[0].mxu0 %v373
        %v416 = vpop.f32.mrb[0].mxu0
        %v417 = vadd.f32 0.0, %v416
        %v418 = vpop.f32.mrb[0].mxu0
        %v419 = vadd.f32 0.0, %v418
        %v420 = vpop.f32.mrb[0].mxu0
        %v421 = vpop.f32.mrb[0].mxu0
        %422 = vdwg.mxu0
        %v424 = vsel %vm371, %v354, 0
        %v427 = vsel %vm375, %v363, 0
        %v430 = vsel %vm375, %v364, 0
        %432 = vmatprep.subr.bf16.mxu0 %v430
        %433 = vmatpush1.bf16.msra.mxu0 %v427
        %434 = vmatprep.subr.bf16.mxu0 0
        %435 = vmatpush1.bf16.msra.mxu0 0
        %436 = vmatprep.subr.bf16.mxu0 0
        %437 = vmatpush1.bf16.msra.mxu0 0
        %438 = vmatprep.subr.bf16.mxu0 0
        %439 = vmatpush1.bf16.msra.mxu0 0
        %440 = vmatprep.subr.bf16.mxu0 0
        %441 = vmatpush1.bf16.msra.mxu0 0
        %442 = vmatprep.subr.bf16.mxu0 0
        %443 = vmatpush1.bf16.msra.mxu0 0
        %444 = vmatprep.subr.bf16.mxu0 0
        %445 = vmatpush1.bf16.msra.mxu0 0
        %446 = vmatprep.subr.bf16.mxu0 0
        %447 = vmatpush1.bf16.msra.mxu0 0
        %448 = vmatprep.subr.bf16.mxu0 0
        %449 = vmatpush1.bf16.msra.mxu0 0
        %450 = vmatprep.subr.bf16.mxu0 0
        %451 = vmatpush1.bf16.msra.mxu0 0
        %452 = vmatprep.subr.bf16.mxu0 0
        %453 = vmatpush1.bf16.msra.mxu0 0
        %454 = vmatprep.subr.bf16.mxu0 0
        %455 = vmatpush1.bf16.msra.mxu0 0
        %456 = vmatprep.subr.bf16.mxu0 0
        %457 = vmatpush1.bf16.msra.mxu0 0
        %458 = vmatprep.subr.bf16.mxu0 0
        %459 = vmatpush1.bf16.msra.mxu0 0
        %460 = vmatprep.subr.bf16.mxu0 0
        %461 = vmatpush1.bf16.msra.mxu0 0
        %462 = vmatprep.subr.bf16.mxu0 0
        %463 = vmatpush1.bf16.msra.mxu0 0
        %464 = vmatprep.mubr.bf16.mxu0 0
        %465 = vmatmul.mubr.bf16.gmra.mrb[0].mxu0 %v424
        %v466 = vpop.f32.mrb[0].mxu0
        %v467 = vadd.f32 %v417, %v466
        %v468 = vpop.f32.mrb[0].mxu0
        %v469 = vadd.f32 %v419, %v468
        %v470 = vpop.f32.mrb[0].mxu0
        %v471 = vpop.f32.mrb[0].mxu0
        %472 = vdwg.mxu0
        %474 = vset.pattern.permute.xlu0 0
        %475 = vperm.xlu0 %474, %v356
        %v476 = vpop.permute.xlu0 %475
        %v478 = vadd.f32 %v467, %v476
        %v479 = vadd.f32 %v469, %v476
        %v480 = vmul.f32 %v478, 0.01
        %v481 = vmul.f32 %v479, 0.01
        %v482 = vmax.f32 %v478, %v480
        %v483 = vmax.f32 %v479, %v481
        %v484 = vpack.c.bf16 %v482, %v482
        %v485 = vpack.c.bf16 %v483, %v483
        %487 = vset.pattern.permute.xlu0 0
        %488 = vperm.xlu0 %487, %v358
        %v489 = vpop.permute.xlu0 %488
        %v491 = vlaneseq
        %v492 = vshrl.u32 %v491, 7
        %v493 = vsub.s32 0, %v492
        %v494 = vrot.slane %v489, %v493
        %vm495 = vcmask 64512
        %v497 = vsel %vm495, %v357, 0
        %vm499 = vcmask 1043456
        %v501 = vsel %vm499, %v484, 0
        %v504 = vsel %vm499, %v485, 0
        %506 = vmatprep.subr.bf16.mxu0 %v504
        %507 = vmatpush1.bf16.msra.mxu0 %v501
        %508 = vmatprep.subr.bf16.mxu0 0
        %509 = vmatpush1.bf16.msra.mxu0 0
        %510 = vmatprep.subr.bf16.mxu0 0
        %511 = vmatpush1.bf16.msra.mxu0 0
        %512 = vmatprep.subr.bf16.mxu0 0
        %513 = vmatpush1.bf16.msra.mxu0 0
        %514 = vmatprep.subr.bf16.mxu0 0
        %515 = vmatpush1.bf16.msra.mxu0 0
        %516 = vmatprep.subr.bf16.mxu0 0
        %517 = vmatpush1.bf16.msra.mxu0 0
        %518 = vmatprep.subr.bf16.mxu0 0
        %519 = vmatpush1.bf16.msra.mxu0 0
        %520 = vmatprep.subr.bf16.mxu0 0
        %521 = vmatpush1.bf16.msra.mxu0 0
        %522 = vmatprep.subr.bf16.mxu0 0
        %523 = vmatpush1.bf16.msra.mxu0 0
        %524 = vmatprep.subr.bf16.mxu0 0
        %525 = vmatpush1.bf16.msra.mxu0 0
        %526 = vmatprep.subr.bf16.mxu0 0
        %527 = vmatpush1.bf16.msra.mxu0 0
        %528 = vmatprep.subr.bf16.mxu0 0
        %529 = vmatpush1.bf16.msra.mxu0 0
        %530 = vmatprep.subr.bf16.mxu0 0
        %531 = vmatpush1.bf16.msra.mxu0 0
        %532 = vmatprep.subr.bf16.mxu0 0
        %533 = vmatpush1.bf16.msra.mxu0 0
        %534 = vmatprep.subr.bf16.mxu0 0
        %535 = vmatpush1.bf16.msra.mxu0 0
        %536 = vmatprep.subr.bf16.mxu0 0
        %537 = vmatpush1.bf16.msra.mxu0 0
        %538 = vmatprep.mubr.bf16.mxu0 0
        %539 = vmatmul.mubr.bf16.gmra.mrb[0].mxu0 %v497
        %v540 = vpop.f32.mrb[0].mxu0
        %v541 = vadd.f32 %v494, %v540
        %v542 = vpop.f32.mrb[0].mxu0
        %v543 = vadd.f32 %v494, %v542
        %v544 = vpop.f32.mrb[0].mxu0
        %v545 = vpop.f32.mrb[0].mxu0
        %546 = vdwg.mxu0
        %v547 = vsub.f32 0.0, %v541
        %v548 = vsub.f32 0.0, %v543
        %v549 = vmul.f32 %v547, 1.442695
        %v550 = vpow.pop %v549
        %v551 = vmul.f32 %v548, 1.442695
        %v552 = vpow.pop %v551
        %v553 = vadd.f32 %v550, 1.0
        %v554 = vadd.f32 %v552, 1.0
        %v555 = vrcp.pop %v553
        %v556 = vrcp.pop %v554
        %v557 = vlaneseq
        %v558 = vshrl.u32 %v557, 7
        %v559 = vsub.s32 0, %v558
        %v560 = vrot.slane %v555, %v559
        %v561 = vlaneseq
        %v562 = vshrl.u32 %v561, 7
        %v563 = vsub.s32 0, %v562
        %v564 = vrot.slane %v556, %v563
        %v567 = vcombine.low %v560, %v564
        %v569 = vmul.f32 %v365, %v567
        %570 = vst [vmem:[%s340] sm:$0xff] %v569
        %s571 = sand.u32 %s209, 1
        %s572 = scalar_lea.sflag [#allocation5], %s571
        %s573 = sand.u32 %s209, 1
        %s574 = smul.addr %s573, 8
        %s575 = scalar_lea.vmem [#allocation6], %s574
        // Predicated region
        $region53: #{tpu_custom_call.1} parent=47 // pred_check
          %p576 = pneg %p219
        $region54: #{tpu_custom_call.1} parent=47 // pred_check_branch
          %578 = sbr.rel (%p576) target = $region56
        $region55: #{tpu_custom_call.1} parent=47 // pred_region
          %s579 = smul.u32 2, %s31
          %s581 = ssub.s32 128, 128
          %582 = vsyncadd %s572, %s581
          %s583 = smul.addr %s30, 2
          %s584 = sadd.s32 %s579, %s583
          %s585 = smul.addr %s584, 64
          %s586 = scalar_lea.hbm %s7, %s585
          %s588 = sshll.u32 %s575, 4
          %s589 = int_to_ptr.vmem [resolvable:$true] %s588
          %591 = dma.vmem_to_hbm [thread:$0]  %s589, 128, %s586, %s572
        $region56: #{tpu_custom_call.1} parent=47 // pred_fallthru
          _
      $region48: #{tpu_custom_call.1} parent=5 // pred_fallthru
        _
      %p592 = scmp.le.s32.totalorder 2, %s21
      // Predicated region
      $region57: #{tpu_custom_call.1} parent=5 // pred_check
        %p593 = pneg %p592
      $region58: #{tpu_custom_call.1} parent=5 // pred_check_branch
        %595 = sbr.rel (%p593) target = $region60
      $region59: #{tpu_custom_call.1} parent=5 // pred_region
        %s596 = ssub.s32 %s21, 2
        // Predicated region
        $region61: #{tpu_custom_call.1} parent=59 // pred_check
          %p597 = pneg %p225
        $region62: #{tpu_custom_call.1} parent=59 // pred_check_branch
          %599 = sbr.rel (%p597) target = $region64
        $region63: #{tpu_custom_call.1} parent=59 // pred_region
          %s600 = sand.u32 %s210, 1
          %s601 = scalar_lea.sflag [#allocation5], %s600
          %s602 = sand.u32 %s210, 1
          %s603 = smul.addr %s602, 8
          %s604 = scalar_lea.vmem [#allocation6], %s603
          %605 = dma.done %s601, 128
        $region64: #{tpu_custom_call.1} parent=59 // pred_fallthru
          _
      $region60: #{tpu_custom_call.1} parent=5 // pred_fallthru
        _
    $region6: #{tpu_custom_call.1} parent=1 // loop_footer
      %s25 = sadd.s32 1, %s21
    $region7: #{tpu_custom_call.1} parent=1 // loop_footer_branch
      %20 = sbr.rel target = $region3
    $region8: #{tpu_custom_call.1} parent=1 // loop_exit
      _
    %606 = vsyncpa [#allocation4], 1
    %s607 = scalar_lea.sflag [#allocation4], 1
    %608 = vsyncpa %s607, 1
    %609 = vsyncpa [#allocation5], 1
    %s610 = scalar_lea.sflag [#allocation5], 1
    %611 = vsyncpa %s610, 1

</llo_original>
